<compile_context>
chip_gen: v7x
topology: tpu7x:2x2x1
jax: 0.10.0
libtpu: 0.0.40
codegen_flags: <defaults>
</compile_context>

<pallas_src>
import functools

import jax
import jax.numpy as jnp
from jax.experimental import pallas as pl
from jax.experimental.pallas import tpu as pltpu

LAYER_ARRAY = [28, 40, 1]  # matches the PyTorch default layer_array


def _mlp_kernel(xT_ref, w1T_ref, b1_ref, w2T_ref, b2_ref, o_ref):
    # xT:  (D_in, TB)   -- batch on lanes
    # w1T: (H, D_in), b1: (H, 1)
    # w2T: (D_out, H), b2: (D_out, 1)
    # out: (D_out, TB)
    x = xT_ref[...]

    # Linear 1 + ReLU:  h = W1^T @ x + b1   -> (H, TB)
    h = jnp.dot(w1T_ref[...], x, preferred_element_type=jnp.float32) + b1_ref[...]
    h = jnp.maximum(h, 0.0)

    # Linear 2 + ReLU:  y = W2^T @ h + b2   -> (D_out, TB)
    y = jnp.dot(w2T_ref[...], h, preferred_element_type=jnp.float32) + b2_ref[...]
    y = jnp.maximum(y, 0.0)

    # Softplus (torch default: beta=1, threshold=20 -> linear above threshold).
    # exp/log1p go to the EUP slot -> free under the HBM/store bottleneck.
    sp = jnp.where(y > 20.0, y, jnp.log1p(jnp.exp(jnp.minimum(y, 20.0))))
    o_ref[...] = sp.astype(o_ref.dtype)


@functools.partial(jax.jit, static_argnames=("tile_b",))
def mlp_forward(x, w1, b1, w2, b2, *, tile_b=512):
    """x: (B, D_in); w1: (D_in, H); b1: (1, H); w2: (H, D_out); b2: (1, D_out).

    Returns the same thing as the PyTorch forward: softplus(...) reshaped to
    (B * D_out,) (== (B,) for the default D_out = 1)."""
    B, D_in = x.shape
    H = w1.shape[1]
    D_out = w2.shape[1]

    assert tile_b % 128 == 0, "tile_b must be a multiple of 128 (lane width)"
    n_steps = pl.cdiv(B, tile_b)
    B_pad = n_steps * tile_b

    # Transposed, lane-dense layouts.  (The x transpose is cheap wrapper glue;
    # ideally the caller supplies x already as (D_in, B).)
    xT = x.T                                   # (D_in, B)
    if B_pad != B:
        xT = jnp.pad(xT, ((0, 0), (0, B_pad - B)))
    w1T = w1.T                                 # (H, D_in)
    w2T = w2.T                                 # (D_out, H)
    b1c = b1.reshape(H, 1)                     # (H, 1)  broadcast over lanes
    b2c = b2.reshape(D_out, 1)                 # (D_out, 1)

    out = pl.pallas_call(
        _mlp_kernel,
        out_shape=jax.ShapeDtypeStruct((D_out, B_pad), jnp.float32),
        grid_spec=pltpu.PrefetchScalarGridSpec(
            num_scalar_prefetch=0,
            grid=(n_steps,),
            in_specs=[
                pl.BlockSpec((D_in, tile_b), lambda i: (0, i)),   # x tile (batch on lanes)
                pl.BlockSpec((H, D_in), lambda i: (0, 0)),        # W1^T (full, ~4.4 KB)
                pl.BlockSpec((H, 1), lambda i: (0, 0)),           # b1
                pl.BlockSpec((D_out, H), lambda i: (0, 0)),       # W2^T (full)
                pl.BlockSpec((D_out, 1), lambda i: (0, 0)),       # b2
            ],
            out_specs=pl.BlockSpec((D_out, tile_b), lambda i: (0, i)),  # lane-dense output
        ),
        compiler_params=pltpu.CompilerParams(
            # Batch axis is independent -> shardable across the 2 v7x TensorCores.
            dimension_semantics=("parallel",)
        ),
    )(xT, w1T, b1c, w2T, b2c)

    # Drop batch padding; match PyTorch's row-major `.reshape(-1)` on (B, D_out).
    return out[:, :B].T.reshape(-1)


def init_params(key, layer_array):
    """Deterministic init mirroring nn.Linear shapes.

    PyTorch stores weight as (out, in); we store (in, out), transposed again in
    the wrapper to (out, in) for the batch-on-lane kernel."""
    params = []
    for i in range(1, len(layer_array)):
        fan_in, fan_out = layer_array[i - 1], layer_array[i]
        key, kw, kb = jax.random.split(key, 3)
        bound = 1.0 / jnp.sqrt(fan_in)
        w = jax.random.uniform(kw, (fan_in, fan_out), jnp.float32, -bound, bound)
        b = jax.random.uniform(kb, (1, fan_out), jnp.float32, -bound, bound)
        params.append((w, b))
    return params


def reference_forward(x, params):
    h = x
    for w, b in params:
        h = jnp.maximum(h @ w + b, 0.0)
    h = jnp.where(h > 20.0, h, jnp.log1p(jnp.exp(jnp.minimum(h, 20.0))))
    return h.reshape(-1)


if __name__ == "__main__":
    key = jax.random.PRNGKey(0)
    key, kx = jax.random.split(key)

    # Non-multiple batch to exercise padding; tile_b=256 -> 2 parallel grid
    # steps (keeps both v7x TensorCores busy) while staying small for the demo.
    B = 300
    x = jax.random.normal(kx, (B, LAYER_ARRAY[0]), jnp.float32)

    (w1, b1), (w2, b2) = init_params(key, LAYER_ARRAY)

    out = mlp_forward(x, w1, b1, w2, b2, tile_b=256)
    out = jax.block_until_ready(out)

    ref = reference_forward(x, [(w1, b1), (w2, b2)])
    assert out.shape == (B,), out.shape
    assert jnp.allclose(out, ref, atol=1e-5, rtol=1e-5), (out, ref)

    print("KERNEL_OK")
</pallas_src>

<mosaic_0001>
module attributes {stable_mosaic.version = 11 : i64} {
  func.func @_mlp_kernel(%arg0: i32, %arg1: memref<28x256xf32, #tpu.memory_space<vmem>>, %arg2: memref<40x28xf32, #tpu.memory_space<vmem>>, %arg3: memref<40x1xf32, #tpu.memory_space<vmem>>, %arg4: memref<1x40xf32, #tpu.memory_space<vmem>>, %arg5: memref<1x1xf32, #tpu.memory_space<vmem>>, %arg6: memref<1x256xf32, #tpu.memory_space<vmem>>) attributes {dimension_semantics = [#tpu.dimension_semantics<parallel>], iteration_bounds = array<i64: 2>, scalar_prefetch = 0 : i64, scratch_operands = 0 : i64, tpu.core_type = #tpu.core_type<tc>, window_params = [{transform_indices = @transform_0, window_bounds = array<i64: 28, 256>}, {pipeline_mode = #tpu.pipeline_mode<synchronous>, transform_indices = @transform_1, window_bounds = array<i64: 40, 28>}, {pipeline_mode = #tpu.pipeline_mode<synchronous>, transform_indices = @transform_2, window_bounds = array<i64: 40, 1>}, {pipeline_mode = #tpu.pipeline_mode<synchronous>, transform_indices = @transform_3, window_bounds = array<i64: 1, 40>}, {pipeline_mode = #tpu.pipeline_mode<synchronous>, transform_indices = @transform_4, window_bounds = array<i64: 1, 1>}, {transform_indices = @transform_5, window_bounds = array<i64: 1, 256>}]} {
    %c0 = arith.constant 0 : index
    %c0_0 = arith.constant 0 : index
    %0 = vector.load %arg1[%c0, %c0_0] : memref<28x256xf32, #tpu.memory_space<vmem>>, vector<28x256xf32>
    %c0_1 = arith.constant 0 : index
    %c0_2 = arith.constant 0 : index
    %1 = vector.load %arg2[%c0_1, %c0_2] : memref<40x28xf32, #tpu.memory_space<vmem>>, vector<40x28xf32>
    %cst = arith.constant dense<0.000000e+00> : vector<40x256xf32>
    %2 = tpu.matmul %1, %0, %cst {dimension_numbers = #tpu.dot_dimension_numbers<[1], [0], [0], [1], [0, 0, 1, 1], [], []>} : vector<40x28xf32>, vector<28x256xf32>, vector<40x256xf32> -> vector<40x256xf32>
    %c0_3 = arith.constant 0 : index
    %c0_4 = arith.constant 0 : index
    %3 = vector.load %arg3[%c0_3, %c0_4] : memref<40x1xf32, #tpu.memory_space<vmem>>, vector<40x1xf32>
    %4 = vector.broadcast %3 : vector<40x1xf32> to vector<40x256xf32>
    %5 = arith.addf %2, %4 : vector<40x256xf32>
    %cst_5 = arith.constant 0.000000e+00 : f32
    %6 = vector.broadcast %cst_5 : f32 to vector<40x256xf32>
    %7 = arith.maximumf %5, %6 : vector<40x256xf32>
    %c0_6 = arith.constant 0 : index
    %c0_7 = arith.constant 0 : index
    %8 = vector.load %arg4[%c0_6, %c0_7] : memref<1x40xf32, #tpu.memory_space<vmem>>, vector<1x40xf32>
    %cst_8 = arith.constant dense<0.000000e+00> : vector<1x256xf32>
    %9 = tpu.matmul %8, %7, %cst_8 {dimension_numbers = #tpu.dot_dimension_numbers<[1], [0], [0], [1], [0, 0, 1, 1], [], []>} : vector<1x40xf32>, vector<40x256xf32>, vector<1x256xf32> -> vector<1x256xf32>
    %c0_9 = arith.constant 0 : index
    %c0_10 = arith.constant 0 : index
    %10 = vector.load %arg5[%c0_9, %c0_10] : memref<1x1xf32, #tpu.memory_space<vmem>>, vector<1x1xf32>
    %11 = vector.broadcast %10 : vector<1x1xf32> to vector<1x256xf32>
    %12 = arith.addf %9, %11 : vector<1x256xf32>
    %cst_11 = arith.constant 0.000000e+00 : f32
    %13 = vector.broadcast %cst_11 : f32 to vector<1x256xf32>
    %14 = arith.maximumf %12, %13 : vector<1x256xf32>
    %cst_12 = arith.constant 2.000000e+01 : f32
    %15 = vector.broadcast %cst_12 : f32 to vector<1x256xf32>
    %16 = arith.cmpf ogt, %14, %15 : vector<1x256xf32>
    %cst_13 = arith.constant 2.000000e+01 : f32
    %17 = vector.broadcast %cst_13 : f32 to vector<1x256xf32>
    %18 = arith.minimumf %14, %17 : vector<1x256xf32>
    %19 = math.exp %18 : vector<1x256xf32>
    %20 = math.log1p %19 : vector<1x256xf32>
    %21 = arith.select %16, %14, %20 : vector<1x256xi1>, vector<1x256xf32>
    %c0_14 = arith.constant 0 : index
    %c0_15 = arith.constant 0 : index
    %22 = vector.load %arg6[%c0_14, %c0_15] : memref<1x256xf32, #tpu.memory_space<vmem>>, vector<1x256xf32>
    tpu.vector_store %arg6[%c0_14, %c0_15], %21 {strides = array<i32>} : memref<1x256xf32, #tpu.memory_space<vmem>>, vector<1x256xf32>,
    return
  }
  func.func @transform_0(%arg0: i32) -> (i32, i32) {
    %c0_i32 = arith.constant 0 : i32
    %c0_i32_0 = arith.constant 0 : i32
    return %c0_i32, %arg0 : i32, i32
  }
  func.func @transform_1(%arg0: i32) -> (i32, i32) {
    %c0_i32 = arith.constant 0 : i32
    %c0_i32_0 = arith.constant 0 : i32
    %c0_i32_1 = arith.constant 0 : i32
    return %c0_i32, %c0_i32_0 : i32, i32
  }
  func.func @transform_2(%arg0: i32) -> (i32, i32) {
    %c0_i32 = arith.constant 0 : i32
    %c0_i32_0 = arith.constant 0 : i32
    %c0_i32_1 = arith.constant 0 : i32
    return %c0_i32, %c0_i32_0 : i32, i32
  }
  func.func @transform_3(%arg0: i32) -> (i32, i32) {
    %c0_i32 = arith.constant 0 : i32
    %c0_i32_0 = arith.constant 0 : i32
    %c0_i32_1 = arith.constant 0 : i32
    return %c0_i32, %c0_i32_0 : i32, i32
  }
  func.func @transform_4(%arg0: i32) -> (i32, i32) {
    %c0_i32 = arith.constant 0 : i32
    %c0_i32_0 = arith.constant 0 : i32
    %c0_i32_1 = arith.constant 0 : i32
    return %c0_i32, %c0_i32_0 : i32, i32
  }
  func.func @transform_5(%arg0: i32) -> (i32, i32) {
    %c0_i32 = arith.constant 0 : i32
    %c0_i32_0 = arith.constant 0 : i32
    return %c0_i32, %arg0 : i32, i32
  }
}

</mosaic_0001>

<llo_original>
// kernel: mlp_forward.1
$region0: #{mlp_forward.1}
  #allocation0 [shape = 'u32[]', space=smem, size = 0x4, offset = 0x4, fixed_abs, tag = 'smem constant byte address 0x4 - core index']
  #allocation1 [shape = 'u32[144,128]{1,0:T(1,128)}', space=vmem, size = 0x12000, scoped, tag = 'internal scratch']
  #allocation2 [shape = 'f32[1,1]{1,0:T(1,128)S(1)}', space=vmem, size = 0x200, scoped, tag = 'scoped memory for mlp_forward.1']
  %s0 = inlined_call_operand.vmem [shape: f32[28,512], index: 0, kind: input, shape index: {}]
  %s1 = inlined_call_operand.vmem [shape: f32[40,28], index: 1, kind: input, shape index: {}]
  %s2 = inlined_call_operand.vmem [shape: f32[40,1], index: 2, kind: input, shape index: {}]
  %s3 = inlined_call_operand.vmem [shape: f32[1,40], index: 3, kind: input, shape index: {}]
  %s4 = inlined_call_operand.<no memory space> [shape: f32[1,1], index: 4, kind: input, shape index: {}]
  %s5 = inlined_call_operand.vmem [shape: f32[1,512], index: 5, kind: output, shape index: {}]
  %s6 = sld [smem:[#allocation0]]
  $region76: #{mlp_forward.1} parent=0
    _
  %s8 = ssub.s32 1, %s6
  %s9 = scalar_select 0, %s8, %s6
  %v10 = vstv %s4
  %11 = vst [vmem:[#allocation2] sm:$0x1] %v10
  $region1: #{mlp_forward.1} parent=0
    #allocation3 [shape = 'u8[65536]{0}', space=vmem, size = 0x10000, scoped, tag = 'input window, operand 0']
    loop: start=0, step=1, limit=4
    $region2: #{mlp_forward.1} parent=1 // loop_pre_header
      _
    $region3: #{mlp_forward.1} parent=1 // loop_header
      %s13 = sphi 0, %s17
      %p14 = scmp.ge.s32.totalorder %s13, 4
      %s23 = sphi 0, %s25
      %s26 = sphi 0, %s23
      %s27 = sphi 0, %s26
      %s43 = sphi 0, %s27
      %s47 = sphi 0, %s47
      %s49 = sphi 0, %s47
      %s50 = sphi 0, %s49
      %s64 = sphi 0, %s50
      %s68 = sphi 0, %s68
      %s70 = sphi 0, %s68
      %s71 = sphi 0, %s70
      %s85 = sphi 0, %s71
      %s89 = sphi 0, %s89
      %s91 = sphi 0, %s89
      %s92 = sphi 0, %s91
      %s106 = sphi 0, %s92
      %s110 = sphi 0, %s110
      %s112 = sphi 0, %s110
      %s113 = sphi 0, %s112
      %s127 = sphi 0, %s113
      %s133 = sphi 0, %s135
      %s136 = sphi 0, %s133
      %s137 = sphi 0, %s136
      %s153 = sphi 0, %s137
    $region4: #{mlp_forward.1} parent=1 // loop_header_branch
      %16 = sbr.rel (%p14) target = $region8
    $region5: #{mlp_forward.1} parent=1 // loop_body
      %s18 = ssub.s32 %s13, 1
      %s19 = ssub.s32 %s13, 2
      %s20 = sadd.s32 %s13, 1
      %s21 = ssub.s32 %s13, %s20
      %p22 = scmp.eq.s32.totalorder %s21, 0
      %s24 = sadd.s32 %s23, 1
      %s25 = scalar_select %p22, %s23, %s24
      %p28 = pneg %p22
      %p29 = scmp.eq.s32.totalorder %s13, 1
      %p30 = por %p28, %p29
      %p31 = scmp.ne.s32.totalorder %s23, %s26
      %p32 = scmp.eq.s32.totalorder %s13, 0
      %p33 = por %p31, %p32
      %p34 = scmp.ne.s32.totalorder %s23, %s26
      %p35 = scmp.eq.s32.totalorder %s18, 1
      %p36 = por %p34, %p35
      %p37 = scmp.ne.s32.totalorder %s26, %s27
      %p38 = scmp.eq.s32.totalorder %s18, 0
      %p39 = por %p37, %p38
      %p40 = scmp.ne.s32.totalorder %s26, %s27
      %p41 = scmp.eq.s32.totalorder %s19, 1
      %p42 = por %p40, %p41
      %p44 = scmp.ne.s32.totalorder %s27, %s43
      %p45 = scmp.eq.s32.totalorder %s19, 0
      %p46 = por %p44, %p45
      %s48 = sadd.s32 %s47, 1
      %p51 = scmp.eq.s32.totalorder %s13, 1
      %p52 = scmp.ne.s32.totalorder %s47, %s49
      %p53 = scmp.eq.s32.totalorder %s13, 0
      %p54 = por %p52, %p53
      %p55 = scmp.ne.s32.totalorder %s47, %s49
      %p56 = scmp.eq.s32.totalorder %s18, 1
      %p57 = por %p55, %p56
      %p58 = scmp.ne.s32.totalorder %s49, %s50
      %p59 = scmp.eq.s32.totalorder %s18, 0
      %p60 = por %p58, %p59
      %p61 = scmp.ne.s32.totalorder %s49, %s50
      %p62 = scmp.eq.s32.totalorder %s19, 1
      %p63 = por %p61, %p62
      %p65 = scmp.ne.s32.totalorder %s50, %s64
      %p66 = scmp.eq.s32.totalorder %s19, 0
      %p67 = por %p65, %p66
      %s69 = sadd.s32 %s68, 1
      %p72 = scmp.eq.s32.totalorder %s13, 1
      %p73 = scmp.ne.s32.totalorder %s68, %s70
      %p74 = scmp.eq.s32.totalorder %s13, 0
      %p75 = por %p73, %p74
      %p76 = scmp.ne.s32.totalorder %s68, %s70
      %p77 = scmp.eq.s32.totalorder %s18, 1
      %p78 = por %p76, %p77
      %p79 = scmp.ne.s32.totalorder %s70, %s71
      %p80 = scmp.eq.s32.totalorder %s18, 0
      %p81 = por %p79, %p80
      %p82 = scmp.ne.s32.totalorder %s70, %s71
      %p83 = scmp.eq.s32.totalorder %s19, 1
      %p84 = por %p82, %p83
      %p86 = scmp.ne.s32.totalorder %s71, %s85
      %p87 = scmp.eq.s32.totalorder %s19, 0
      %p88 = por %p86, %p87
      %s90 = sadd.s32 %s89, 1
      %p93 = scmp.eq.s32.totalorder %s13, 1
      %p94 = scmp.ne.s32.totalorder %s89, %s91
      %p95 = scmp.eq.s32.totalorder %s13, 0
      %p96 = por %p94, %p95
      %p97 = scmp.ne.s32.totalorder %s89, %s91
      %p98 = scmp.eq.s32.totalorder %s18, 1
      %p99 = por %p97, %p98
      %p100 = scmp.ne.s32.totalorder %s91, %s92
      %p101 = scmp.eq.s32.totalorder %s18, 0
      %p102 = por %p100, %p101
      %p103 = scmp.ne.s32.totalorder %s91, %s92
      %p104 = scmp.eq.s32.totalorder %s19, 1
      %p105 = por %p103, %p104
      %p107 = scmp.ne.s32.totalorder %s92, %s106
      %p108 = scmp.eq.s32.totalorder %s19, 0
      %p109 = por %p107, %p108
      %s111 = sadd.s32 %s110, 1
      %p114 = scmp.eq.s32.totalorder %s13, 1
      %p115 = scmp.ne.s32.totalorder %s110, %s112
      %p116 = scmp.eq.s32.totalorder %s13, 0
      %p117 = por %p115, %p116
      %p118 = scmp.ne.s32.totalorder %s110, %s112
      %p119 = scmp.eq.s32.totalorder %s18, 1
      %p120 = por %p118, %p119
      %p121 = scmp.ne.s32.totalorder %s112, %s113
      %p122 = scmp.eq.s32.totalorder %s18, 0
      %p123 = por %p121, %p122
      %p124 = scmp.ne.s32.totalorder %s112, %s113
      %p125 = scmp.eq.s32.totalorder %s19, 1
      %p126 = por %p124, %p125
      %p128 = scmp.ne.s32.totalorder %s113, %s127
      %p129 = scmp.eq.s32.totalorder %s19, 0
      %p130 = por %p128, %p129
      %s131 = ssub.s32 %s13, %s20
      %p132 = scmp.eq.s32.totalorder %s131, 0
      %s134 = sadd.s32 %s133, 1
      %s135 = scalar_select %p132, %s133, %s134
      %p138 = pneg %p132
      %p139 = scmp.eq.s32.totalorder %s13, 1
      %p140 = por %p138, %p139
      %p141 = scmp.ne.s32.totalorder %s133, %s136
      %p142 = scmp.eq.s32.totalorder %s13, 0
      %p143 = por %p141, %p142
      %p144 = scmp.ne.s32.totalorder %s133, %s136
      %p145 = scmp.eq.s32.totalorder %s18, 1
      %p146 = por %p144, %p145
      %p147 = scmp.ne.s32.totalorder %s136, %s137
      %p148 = scmp.eq.s32.totalorder %s18, 0
      %p149 = por %p147, %p148
      %p150 = scmp.ne.s32.totalorder %s136, %s137
      %p151 = scmp.eq.s32.totalorder %s19, 1
      %p152 = por %p150, %p151
      %p154 = scmp.ne.s32.totalorder %s137, %s153
      %p155 = scmp.eq.s32.totalorder %s19, 0
      %p156 = por %p154, %p155
      %p157 = scmp.le.s32.totalorder 1, %s13
      %p158 = scmp.lt.s32.totalorder %s13, 3
      %p159 = pnand %p157, %p158
      %p160 = pneg %p159
      // Predicated region
      $region9: #{mlp_forward.1} parent=5 // pred_check
        _
      $region10: #{mlp_forward.1} parent=5 // pred_check_branch
        %162 = sbr.rel (%p159) target = $region12
      $region11: #{mlp_forward.1} parent=5 // pred_region
        %s163 = ssub.s32 %s13, 1
        // Predicated region
        $region13: #{mlp_forward.1} parent=11 // pred_check
          %p164 = pneg %p60
        $region14: #{mlp_forward.1} parent=11 // pred_check_branch
          %166 = sbr.rel (%p164) target = $region16
        $region15: #{mlp_forward.1} parent=11 // pred_region
          _
        $region16: #{mlp_forward.1} parent=11 // pred_fallthru
          _
        // Predicated region
        $region17: #{mlp_forward.1} parent=11 // pred_check
          %p167 = pneg %p81
        $region18: #{mlp_forward.1} parent=11 // pred_check_branch
          %169 = sbr.rel (%p167) target = $region20
        $region19: #{mlp_forward.1} parent=11 // pred_region
          _
        $region20: #{mlp_forward.1} parent=11 // pred_fallthru
          _
        // Predicated region
        $region21: #{mlp_forward.1} parent=11 // pred_check
          %p170 = pneg %p102
        $region22: #{mlp_forward.1} parent=11 // pred_check_branch
          %172 = sbr.rel (%p170) target = $region24
        $region23: #{mlp_forward.1} parent=11 // pred_region
          _
        $region24: #{mlp_forward.1} parent=11 // pred_fallthru
          _
        // Predicated region
        $region25: #{mlp_forward.1} parent=11 // pred_check
          %p173 = pneg %p123
        $region26: #{mlp_forward.1} parent=11 // pred_check_branch
          %175 = sbr.rel (%p173) target = $region28
        $region27: #{mlp_forward.1} parent=11 // pred_region
          _
        $region28: #{mlp_forward.1} parent=11 // pred_fallthru
          _
      $region12: #{mlp_forward.1} parent=5 // pred_fallthru
        _
      %p176 = scmp.lt.s32.totalorder %s13, 2
      // Predicated region
      $region29: #{mlp_forward.1} parent=5 // pred_check
        %p177 = pneg %p176
      $region30: #{mlp_forward.1} parent=5 // pred_check_branch
        %179 = sbr.rel (%p177) target = $region32
      $region31: #{mlp_forward.1} parent=5 // pred_region
        // Predicated region
        $region33: #{mlp_forward.1} parent=31 // pred_check
          %p180 = pneg %p33
        $region34: #{mlp_forward.1} parent=31 // pred_check_branch
          %182 = sbr.rel (%p180) target = $region36
        $region35: #{mlp_forward.1} parent=31 // pred_region
          %s183 = sand.u32 %s23, 1
          %s184 = sand.u32 %s23, 1
          %s185 = smul.addr %s184, 64
          %s186 = scalar_lea.vmem [#allocation3], %s185
          %s187 = smul.u32 2, %s13
          %s188 = smul.addr %s187, 8
          %s189 = scalar_lea.vmem %s0, %s188
          // Predicated region
          $region37: #{mlp_forward.1} parent=35 // pred_check
            _
          $region38: #{mlp_forward.1} parent=35 // pred_check_branch
            %191 = sbr.rel (0) target = $region40
          $region39: #{mlp_forward.1} parent=35 // pred_region
            // Predicated region
            $region41: #{mlp_forward.1} parent=39 // pred_check
              _
            $region42: #{mlp_forward.1} parent=39 // pred_check_branch
              %193 = sbr.rel (0) target = $region44
            $region43: #{mlp_forward.1} parent=39 // pred_region
              loop: start=0, step=1, limit=1
              $region45: #{mlp_forward.1} parent=43 // loop_pre_header
                _
              $region46: #{mlp_forward.1} parent=43 // loop_header
                %s195 = sphi 0, %s199
                %p196 = scmp.ge.s32.totalorder %s195, 1
                %s200 = sphi %s189, %s189
                %s201 = sphi %s186, %s186
              $region47: #{mlp_forward.1} parent=43 // loop_header_branch
                %198 = sbr.rel (%p196) target = $region51
              $region48: #{mlp_forward.1} parent=43 // loop_body
                %v202 = vld [vmem:[%s200] sm:$0xff]
                %203 = vst [vmem:[%s201] sm:$0xff] %v202
                %v204 = vld [vmem:[%s200 + $0x8] sm:$0xff]
                %205 = vst [vmem:[%s201 + $0x8] sm:$0xff] %v204
                %v206 = vld [vmem:[%s200 + $0x20] sm:$0xff]
                %207 = vst [vmem:[%s201 + $0x10] sm:$0xff] %v206
                %v208 = vld [vmem:[%s200 + $0x28] sm:$0xff]
                %209 = vst [vmem:[%s201 + $0x18] sm:$0xff] %v208
                %v210 = vld [vmem:[%s200 + $0x40] sm:$0xff]
                %211 = vst [vmem:[%s201 + $0x20] sm:$0xff] %v210
                %v212 = vld [vmem:[%s200 + $0x48] sm:$0xff]
                %213 = vst [vmem:[%s201 + $0x28] sm:$0xff] %v212
                %v214 = vld [vmem:[%s200 + $0x60] sm:$0xff]
                %215 = vst [vmem:[%s201 + $0x30] sm:$0xff] %v214
                %v216 = vld [vmem:[%s200 + $0x68] sm:$0xff]
                %217 = vst [vmem:[%s201 + $0x38] sm:$0xff] %v216
              $region49: #{mlp_forward.1} parent=43 // loop_footer
                %s199 = sadd.s32 1, %s195
              $region50: #{mlp_forward.1} parent=43 // loop_footer_branch
                %194 = sbr.rel target = $region46
              $region51: #{mlp_forward.1} parent=43 // loop_exit
                _
            $region44: #{mlp_forward.1} parent=39 // pred_fallthru
              _
            // Predicated region
            $region52: #{mlp_forward.1} parent=39 // pred_check
              _
            $region53: #{mlp_forward.1} parent=39 // pred_check_branch
              %219 = sbr.rel target = $region55
            $region54: #{mlp_forward.1} parent=39 // pred_region
              _
            $region55: #{mlp_forward.1} parent=39 // pred_fallthru
              _
          $region40: #{mlp_forward.1} parent=35 // pred_fallthru
            _
          %220 = vnop
        $region36: #{mlp_forward.1} parent=31 // pred_fallthru
          _
      $region32: #{mlp_forward.1} parent=5 // pred_fallthru
        _
      %p221 = scmp.le.s32.totalorder 1, %s13
      %p222 = scmp.lt.s32.totalorder %s13, 3
      %p223 = pnand %p221, %p222
      %p224 = pneg %p223
      // Predicated region
      $region56: #{mlp_forward.1} parent=5 // pred_check
        _
      $region57: #{mlp_forward.1} parent=5 // pred_check_branch
        %226 = sbr.rel (%p223) target = $region59
      $region58: #{mlp_forward.1} parent=5 // pred_region
        %s227 = ssub.s32 %s13, 1
        %s228 = sand.u32 %s26, 1
        %s229 = sand.u32 %s26, 1
        %s230 = smul.addr %s229, 64
        %s231 = scalar_lea.vmem [#allocation3], %s230
        // Predicated region
        $region60: #{mlp_forward.1} parent=58 // pred_check
          %p232 = pneg %p39
        $region61: #{mlp_forward.1} parent=58 // pred_check_branch
          %234 = sbr.rel (%p232) target = $region63
        $region62: #{mlp_forward.1} parent=58 // pred_region
          _
        $region63: #{mlp_forward.1} parent=58 // pred_fallthru
          _
        %s235 = sand.u32 %s26, 1
        %s236 = sand.u32 %s26, 1
        %s237 = smul.addr %s236, 64
        %s238 = scalar_lea.vmem [#allocation3], %s237
        %p239 = pneg %p39
        %p240 = pneg %p36
        %p241 = pneg %p60
        %p242 = pneg %p57
        %p243 = pneg %p81
        %p244 = pneg %p78
        %p245 = pneg %p102
        %p246 = pneg %p99
        %p247 = pneg %p123
        %p248 = pneg %p120
        %p249 = pneg %p149
        %p250 = pneg %p146
        %s251 = smul.u32 2, %s18
        %p252 = scmp.lt.s32.totalorder %s251, 3
        %s253 = scalar_select %p252, %s251, 3
        %s254 = scalar_lea.vmem %s5, %s253
        %s255 = smul.u32 2, %s18
        %s256 = smul.u32 2, %s18
        %p257 = scmp.lt.s32.totalorder %s256, 3
        %s258 = scalar_select %p257, %s256, 3
        %s259 = scalar_lea.vmem %s5, %s258
        %s260 = smul.u32 2, %s18
        %v261 = vld [vmem:[%s231] sm:$0xff]
        %v262 = vld [vmem:[%s231 + $0x8] sm:$0xff]
        %v263 = vld [vmem:[%s231 + $0x10] sm:$0xff]
        %v264 = vld [vmem:[%s231 + $0x18] sm:$0xff]
        %v265 = vld [vmem:[%s231 + $0x20] sm:$0xff]
        %v266 = vld [vmem:[%s231 + $0x28] sm:$0xff]
        %v267 = vld [vmem:[%s231 + $0x30] sm:$0xf]
        %v268 = vld [vmem:[%s231 + $0x38] sm:$0xf]
        %v269 = vld [vmem:[%s1] sm:$0xff]
        %v270 = vld [vmem:[%s1 + $0x8] sm:$0xff]
        %v271 = vld [vmem:[%s1 + $0x10] sm:$0xff]
        %v272 = vld [vmem:[%s1 + $0x18] sm:$0xff]
        %v273 = vld [vmem:[%s1 + $0x20] sm:$0xff]
        %v274 = vld [vmem:[%s2] sm:$0xff]
        %v275 = vld [vmem:[%s2 + $0x8] sm:$0xff]
        %v276 = vld [vmem:[%s2 + $0x10] sm:$0xff]
        %v277 = vld [vmem:[%s2 + $0x18] sm:$0xff]
        %v278 = vld [vmem:[%s2 + $0x20] sm:$0xff]
        %280 = vset.pattern.permute.xlu0 0
        %281 = vperm.xlu0 %280, %v274
        %v282 = vpop.permute.xlu0 %281
        %285 = vset.pattern.permute.xlu0 0
        %286 = vperm.xlu0 %285, %v275
        %v287 = vpop.permute.xlu0 %286
        %290 = vset.pattern.permute.xlu0 0
        %291 = vperm.xlu0 %290, %v276
        %v292 = vpop.permute.xlu0 %291
        %295 = vset.pattern.permute.xlu0 0
        %296 = vperm.xlu0 %295, %v277
        %v297 = vpop.permute.xlu0 %296
        %300 = vset.pattern.permute.xlu0 0
        %301 = vperm.xlu0 %300, %v278
        %v302 = vpop.permute.xlu0 %301
        %vm304 = vcmask 228352
        %v306 = vsel %vm304, %v269, 0
        %v309 = vsel %vm304, %v270, 0
        %v312 = vsel %vm304, %v271, 0
        %v315 = vsel %vm304, %v272, 0
        %v318 = vsel %vm304, %v273, 0
        %vm320 = vcmask 1043456
        %v322 = vsel %vm320, %v267, 0
        %v325 = vsel %vm320, %v268, 0
        %327 = vmatprep.subr.mxu0 %v262
        %328 = vmatpush1.msra.mxu0 %v261
        %329 = vmatprep.subr.mxu0 %v264
        %330 = vmatpush1.msra.mxu0 %v263
        %331 = vmatprep.subr.mxu0 %v266
        %332 = vmatpush1.msra.mxu0 %v265
        %333 = vmatprep.subr.mxu0 %v325
        %334 = vmatpush1.msra.mxu0 %v322
        %335 = vmatprep.subr.mxu0 0.0
        %336 = vmatpush1.msra.mxu0 0.0
        %337 = vmatprep.subr.mxu0 0.0
        %338 = vmatpush1.msra.mxu0 0.0
        %339 = vmatprep.subr.mxu0 0.0
        %340 = vmatpush1.msra.mxu0 0.0
        %341 = vmatprep.subr.mxu0 0.0
        %342 = vmatpush1.msra.mxu0 0.0
        %343 = vmatprep.subr.mxu0 0.0
        %344 = vmatpush1.msra.mxu0 0.0
        %345 = vmatprep.subr.mxu0 0.0
        %346 = vmatpush1.msra.mxu0 0.0
        %347 = vmatprep.subr.mxu0 0.0
        %348 = vmatpush1.msra.mxu0 0.0
        %349 = vmatprep.subr.mxu0 0.0
        %350 = vmatpush1.msra.mxu0 0.0
        %351 = vmatprep.subr.mxu0 0.0
        %352 = vmatpush1.msra.mxu0 0.0
        %353 = vmatprep.subr.mxu0 0.0
        %354 = vmatpush1.msra.mxu0 0.0
        %355 = vmatprep.subr.mxu0 0.0
        %356 = vmatpush1.msra.mxu0 0.0
        %357 = vmatprep.subr.mxu0 0.0
        %358 = vmatpush1.msra.mxu0 0.0
        %359 = vmatprep.subr.mxu0 0.0
        %360 = vmatpush1.msra.mxu0 0.0
        %361 = vmatprep.subr.mxu0 0.0
        %362 = vmatpush1.msra.mxu0 0.0
        %363 = vmatprep.subr.mxu0 0.0
        %364 = vmatpush1.msra.mxu0 0.0
        %365 = vmatprep.subr.mxu0 0.0
        %366 = vmatpush1.msra.mxu0 0.0
        %367 = vmatprep.subr.mxu0 0.0
        %368 = vmatpush1.msra.mxu0 0.0
        %369 = vmatprep.subr.mxu0 0.0
        %370 = vmatpush1.msra.mxu0 0.0
        %371 = vmatprep.subr.mxu0 0.0
        %372 = vmatpush1.msra.mxu0 0.0
        %373 = vmatprep.subr.mxu0 0.0
        %374 = vmatpush1.msra.mxu0 0.0
        %375 = vmatprep.subr.mxu0 0.0
        %376 = vmatpush1.msra.mxu0 0.0
        %377 = vmatprep.subr.mxu0 0.0
        %378 = vmatpush1.msra.mxu0 0.0
        %379 = vmatprep.subr.mxu0 0.0
        %380 = vmatpush1.msra.mxu0 0.0
        %381 = vmatprep.subr.mxu0 0.0
        %382 = vmatpush1.msra.mxu0 0.0
        %383 = vmatprep.subr.mxu0 0.0
        %384 = vmatpush1.msra.mxu0 0.0
        %385 = vmatprep.subr.mxu0 0.0
        %386 = vmatpush1.msra.mxu0 0.0
        %387 = vmatprep.subr.mxu0 0.0
        %388 = vmatpush1.msra.mxu0 0.0
        %389 = vmatprep.subr.mxu0 0.0
        %390 = vmatpush1.msra.mxu0 0.0
        %391 = vmatprep.mubr.f32.mxu0 0.0
        %392 = vmatmul.mubr.f32.gmra.mrb[0].mxu0 %v306
        %v393 = vpop.f32.mrb[0].mxu0
        %v394 = vadd.f32 %v282, %v393
        %v395 = vpop.f32.mrb[0].mxu0
        %v396 = vadd.f32 %v282, %v395
        %397 = vmatprep.mubr.f32.mxu0 0.0
        %398 = vmatmul.mubr.f32.gmra.mrb[0].mxu0 %v309
        %v399 = vpop.f32.mrb[0].mxu0
        %v400 = vadd.f32 %v287, %v399
        %v401 = vpop.f32.mrb[0].mxu0
        %v402 = vadd.f32 %v287, %v401
        %403 = vmatprep.mubr.f32.mxu0 0.0
        %404 = vmatmul.mubr.f32.gmra.mrb[0].mxu0 %v312
        %v405 = vpop.f32.mrb[0].mxu0
        %v406 = vadd.f32 %v292, %v405
        %v407 = vpop.f32.mrb[0].mxu0
        %v408 = vadd.f32 %v292, %v407
        %409 = vmatprep.mubr.f32.mxu0 0.0
        %410 = vmatmul.mubr.f32.gmra.mrb[0].mxu0 %v315
        %v411 = vpop.f32.mrb[0].mxu0
        %v412 = vadd.f32 %v297, %v411
        %v413 = vpop.f32.mrb[0].mxu0
        %v414 = vadd.f32 %v297, %v413
        %415 = vmatprep.mubr.f32.mxu0 0.0
        %416 = vmatmul.mubr.f32.gmra.mrb[0].mxu0 %v318
        %v417 = vpop.f32.mrb[0].mxu0
        %v418 = vadd.f32 %v302, %v417
        %v419 = vpop.f32.mrb[0].mxu0
        %v420 = vadd.f32 %v302, %v419
        %421 = vdwg.mxu0
        %v422 = vmax.f32 %v394, 0.0
        %v423 = vmax.f32 %v396, 0.0
        %v424 = vmax.f32 %v400, 0.0
        %v425 = vmax.f32 %v402, 0.0
        %v426 = vmax.f32 %v406, 0.0
        %v427 = vmax.f32 %v408, 0.0
        %v428 = vmax.f32 %v412, 0.0
        %v429 = vmax.f32 %v414, 0.0
        %v430 = vmax.f32 %v418, 0.0
        %v431 = vmax.f32 %v420, 0.0
        %v432 = vld [vmem:[%s3] sm:$0x1]
        %v433 = vld [vmem:[#allocation2] sm:$0x1]
        %435 = vset.pattern.permute.xlu0 0
        %436 = vperm.xlu0 %435, %v433
        %v437 = vpop.permute.xlu0 %436
        %v439 = vlaneseq
        %v440 = vshrl.u32 %v439, 7
        %v441 = vsub.s32 0, %v440
        %v442 = vrot.slane %v437, %v441
        %vm443 = vcmask 326656
        %v445 = vsel %vm443, %v432, 0
        %447 = vmatprep.subr.mxu0 %v423
        %448 = vmatpush1.msra.mxu0 %v422
        %449 = vmatprep.subr.mxu0 %v425
        %450 = vmatpush1.msra.mxu0 %v424
        %451 = vmatprep.subr.mxu0 %v427
        %452 = vmatpush1.msra.mxu0 %v426
        %453 = vmatprep.subr.mxu0 %v429
        %454 = vmatpush1.msra.mxu0 %v428
        %455 = vmatprep.subr.mxu0 %v431
        %456 = vmatpush1.msra.mxu0 %v430
        %457 = vmatprep.subr.mxu0 0.0
        %458 = vmatpush1.msra.mxu0 0.0
        %459 = vmatprep.subr.mxu0 0.0
        %460 = vmatpush1.msra.mxu0 0.0
        %461 = vmatprep.subr.mxu0 0.0
        %462 = vmatpush1.msra.mxu0 0.0
        %463 = vmatprep.subr.mxu0 0.0
        %464 = vmatpush1.msra.mxu0 0.0
        %465 = vmatprep.subr.mxu0 0.0
        %466 = vmatpush1.msra.mxu0 0.0
        %467 = vmatprep.subr.mxu0 0.0
        %468 = vmatpush1.msra.mxu0 0.0
        %469 = vmatprep.subr.mxu0 0.0
        %470 = vmatpush1.msra.mxu0 0.0
        %471 = vmatprep.subr.mxu0 0.0
        %472 = vmatpush1.msra.mxu0 0.0
        %473 = vmatprep.subr.mxu0 0.0
        %474 = vmatpush1.msra.mxu0 0.0
        %475 = vmatprep.subr.mxu0 0.0
        %476 = vmatpush1.msra.mxu0 0.0
        %477 = vmatprep.subr.mxu0 0.0
        %478 = vmatpush1.msra.mxu0 0.0
        %479 = vmatprep.subr.mxu0 0.0
        %480 = vmatpush1.msra.mxu0 0.0
        %481 = vmatprep.subr.mxu0 0.0
        %482 = vmatpush1.msra.mxu0 0.0
        %483 = vmatprep.subr.mxu0 0.0
        %484 = vmatpush1.msra.mxu0 0.0
        %485 = vmatprep.subr.mxu0 0.0
        %486 = vmatpush1.msra.mxu0 0.0
        %487 = vmatprep.subr.mxu0 0.0
        %488 = vmatpush1.msra.mxu0 0.0
        %489 = vmatprep.subr.mxu0 0.0
        %490 = vmatpush1.msra.mxu0 0.0
        %491 = vmatprep.subr.mxu0 0.0
        %492 = vmatpush1.msra.mxu0 0.0
        %493 = vmatprep.subr.mxu0 0.0
        %494 = vmatpush1.msra.mxu0 0.0
        %495 = vmatprep.subr.mxu0 0.0
        %496 = vmatpush1.msra.mxu0 0.0
        %497 = vmatprep.subr.mxu0 0.0
        %498 = vmatpush1.msra.mxu0 0.0
        %499 = vmatprep.subr.mxu0 0.0
        %500 = vmatpush1.msra.mxu0 0.0
        %501 = vmatprep.subr.mxu0 0.0
        %502 = vmatpush1.msra.mxu0 0.0
        %503 = vmatprep.subr.mxu0 0.0
        %504 = vmatpush1.msra.mxu0 0.0
        %505 = vmatprep.subr.mxu0 0.0
        %506 = vmatpush1.msra.mxu0 0.0
        %507 = vmatprep.subr.mxu0 0.0
        %508 = vmatpush1.msra.mxu0 0.0
        %509 = vmatprep.subr.mxu0 0.0
        %510 = vmatpush1.msra.mxu0 0.0
        %511 = vmatprep.mubr.f32.mxu0 0.0
        %512 = vmatmul.mubr.f32.gmra.mrb[0].mxu0 %v445
        %v513 = vpop.f32.mrb[0].mxu0
        %v514 = vadd.f32 %v442, %v513
        %v515 = vpop.f32.mrb[0].mxu0
        %v516 = vadd.f32 %v442, %v515
        %517 = vdwg.mxu0
        %v518 = vmax.f32 %v514, 0.0
        %v519 = vmax.f32 %v516, 0.0
        %vm520 = vcmp.gt.f32.partialorder %v518, 20.0
        %vm521 = vcmp.gt.f32.partialorder %v519, 20.0
        %v522 = vmin.f32 %v518, 20.0
        %v523 = vmin.f32 %v519, 20.0
        %v524 = vmul.f32 %v522, 1.442695
        %v525 = vpow.pop %v524
        %v526 = vmul.f32 %v523, 1.442695
        %v527 = vpow.pop %v526
        %v528 = vadd.f32 %v525, 1.0
        %v529 = vlog2.pop %v528
        %v530 = vmul.f32 %v529, 0.6931472
        %v531 = vmul.f32 -0.5, %v525
        %v532 = vadd.f32 %v531, 1.0
        %v533 = vmul.f32 %v532, %v525
        %v534 = vand.u32 2147483647, %v525
        %vm535 = vcmp.lt.f32.partialorder %v534, 0.0004427343
        %v536 = vsel %vm535, %v533, %v530
        %v537 = vadd.f32 %v527, 1.0
        %v538 = vlog2.pop %v537
        %v539 = vmul.f32 %v538, 0.6931472
        %v540 = vmul.f32 -0.5, %v527
        %v541 = vadd.f32 %v540, 1.0
        %v542 = vmul.f32 %v541, %v527
        %v543 = vand.u32 2147483647, %v527
        %vm544 = vcmp.lt.f32.partialorder %v543, 0.0004427343
        %v545 = vsel %vm544, %v542, %v539
        %v546 = vsel %vm520, %v518, %v536
        %v547 = vsel %vm521, %v519, %v545
        %v550 = vcombine.low %v546, %v547
        %v552 = vunpack.c.l.s4 1966171168
        %v553 = vunpack.c.0.s8 %v552
        %v554 = vlaneseq
        %v555 = vshrl.u32 %v554, 7
        %v556 = vsub.s32 %v553, %v555
        %v557 = vrot.slane %v550, %v556
        %v559 = vunpack.c.l.s4 1966171168
        %v560 = vunpack.c.0.s8 %v559
        %v561 = vlaneseq
        %v562 = vshrl.u32 %v561, 7
        %v563 = vsub.s32 %v560, %v562
        %v564 = vrot.slane %v557, %v563
        %v566 = vlaneseq
        %vm567 = vcmp.ge.s32.totalorder %v566, 0
        %vm568 = vcmp.lt.s32.totalorder %v566, 256
        %vm569 = vmand %vm567, %vm568
        %570 = vst.msk [vmem:[%s259] sm:$0x3] %vm569, %v564
        %s571 = smul.u32 2, %s18
        %p572 = scmp.lt.s32.totalorder %s571, 3
        %s573 = scalar_select %p572, %s571, 3
        %s574 = scalar_lea.vmem %s5, %s573
        // Predicated region
        $region64: #{mlp_forward.1} parent=58 // pred_check
          %p575 = pneg %p146
        $region65: #{mlp_forward.1} parent=58 // pred_check_branch
          %577 = sbr.rel (%p575) target = $region67
        $region66: #{mlp_forward.1} parent=58 // pred_region
          %s578 = smul.u32 2, %s18
        $region67: #{mlp_forward.1} parent=58 // pred_fallthru
          _
      $region59: #{mlp_forward.1} parent=5 // pred_fallthru
        _
      %p579 = scmp.le.s32.totalorder 2, %s13
      // Predicated region
      $region68: #{mlp_forward.1} parent=5 // pred_check
        %p580 = pneg %p579
      $region69: #{mlp_forward.1} parent=5 // pred_check_branch
        %582 = sbr.rel (%p580) target = $region71
      $region70: #{mlp_forward.1} parent=5 // pred_region
        %s583 = ssub.s32 %s13, 2
        // Predicated region
        $region72: #{mlp_forward.1} parent=70 // pred_check
          %p584 = pneg %p152
        $region73: #{mlp_forward.1} parent=70 // pred_check_branch
          %586 = sbr.rel (%p584) target = $region75
        $region74: #{mlp_forward.1} parent=70 // pred_region
          %s587 = smul.u32 2, %s19
          %p588 = scmp.lt.s32.totalorder %s587, 3
          %s589 = scalar_select %p588, %s587, 3
          %s590 = scalar_lea.vmem %s5, %s589
        $region75: #{mlp_forward.1} parent=70 // pred_fallthru
          _
      $region71: #{mlp_forward.1} parent=5 // pred_fallthru
        _
    $region6: #{mlp_forward.1} parent=1 // loop_footer
      %s17 = sadd.s32 1, %s13
    $region7: #{mlp_forward.1} parent=1 // loop_footer_branch
      %12 = sbr.rel target = $region3
    $region8: #{mlp_forward.1} parent=1 // loop_exit
      _

</llo_original>
